<compile_context>
chip_gen: v7x
topology: tpu7x:2x2x1
jax: 0.10.0
libtpu: 0.0.40
codegen_flags: <defaults>
</compile_context>

<pallas_src>
import functools
import math

import jax
import jax.numpy as jnp
from jax.experimental import pallas as pl
from jax.experimental.pallas import tpu as pltpu


# ----------------------------------------------------------------------------- #
# Small helpers
# ----------------------------------------------------------------------------- #
def _cdiv(a, b):
    return (a + b - 1) // b


def _round_down(x, m):
    return (x // m) * m


@functools.lru_cache(maxsize=1)
def _default_n_shards():
    # Only v7x-class chips have two TensorCores per chip; v5e/v6e are single-TC,
    # where a 2-wide "parallel" shard axis only adds a wasted masked padding tile.
    try:
        kind = jax.devices()[0].device_kind.lower()
    except Exception:
        return 1
    return 2 if "7" in kind else 1


# ----------------------------------------------------------------------------- #
# Pallas kernel: lane-resident CE accumulation + (optional) class-presence max,
# with cross-lane reductions deferred to a per-shard epilogue.
# ----------------------------------------------------------------------------- #
def _ce_presence_kernel(x_ref, y_ref, loss_ref, pres_ref, nll_acc, pres_acc,
                        *, HW, compute_presence):
    """Grid = (n_shards [parallel], n_tiles_per_shard [arbitrary]).

    x_ref   : (B, C, T) logits tile (native dtype, upcast to f32 in-register)
    y_ref   : (B, 1, T) label tile  (native narrow int dtype, widened in-register)
    loss_ref: (1, 1, 1) f32 per-shard nll sum            (written in epilogue)
    pres_ref: (1, B, C) f32 per-shard class presence     (written in epilogue)
    nll_acc : (B, 1, T) f32 lane-resident nll accumulator (scratch)
    pres_acc: (B, C, T) f32 lane-resident presence max    (scratch)
    """
    B, C, T = x_ref.shape
    s = pl.program_id(0)
    ti = pl.program_id(1)
    nt = pl.num_programs(1)

    @pl.when(ti == 0)
    def _init():
        nll_acc[...] = jnp.zeros_like(nll_acc)
        pres_acc[...] = jnp.zeros_like(pres_acc)

    # Logical (un-clamped) tile index -> mask padded lanes / clamped padding tiles.
    tile_idx = s * nt + ti
    col = tile_idx * T + jax.lax.broadcasted_iota(jnp.int32, (1, 1, T), 2)   # (1,1,T)
    valid = col < HW

    xb = x_ref[...].astype(jnp.float32)                                      # (B, C, T)
    yb = y_ref[...].astype(jnp.int32)                                        # (B, 1, T)
    cls = jax.lax.broadcasted_iota(jnp.int32, (B, C, T), 1)
    onehot = cls == yb                                                       # (B, C, T) bool

    # nll = m + log(sum exp(x - m)) - x[target]   (no full logp materialized)
    m = jnp.max(xb, axis=1, keepdims=True)                                   # (B, 1, T)
    sumexp = jnp.sum(jnp.exp(xb - m), axis=1, keepdims=True)                 # (B, 1, T)
    x_tgt = jnp.sum(jnp.where(onehot, xb, 0.0), axis=1, keepdims=True)       # (B, 1, T)
    nll = m + jnp.log(sumexp) - x_tgt                                        # (B, 1, T)

    # Lane-resident accumulation only; use select (not multiply) so garbage/NaN
    # from out-of-bounds padded reads can never leak into the accumulators.
    nll_acc[...] += jnp.where(valid, nll, 0.0)
    if compute_presence:
        pres_acc[...] = jnp.maximum(
            pres_acc[...], jnp.where(jnp.logical_and(valid, onehot), 1.0, 0.0))

    @pl.when(ti == nt - 1)
    def _finalize():
        loss_ref[...] = jnp.sum(nll_acc[...], keepdims=True)                 # (1,1,1)
        if compute_presence:
            pres_ref[...] = jnp.max(pres_acc[...], axis=2)[None, :, :]       # (1,B,C)
        else:
            pres_ref[...] = jnp.zeros_like(pres_ref)


# ----------------------------------------------------------------------------- #
# Pallas wrapper for one deep-supervision level
# ----------------------------------------------------------------------------- #
def _ce_presence_pallas(logits, labels, *, tile_hw=None, n_shards=None,
                        compute_presence=True):
    """Returns (mean_nll, presence[B, C]) for one level via the tiled kernel."""
    b = logits.shape[0]
    c = logits.shape[1]
    hw = math.prod(logits.shape[2:])

    x = logits.reshape(b, c, hw)          # native dtype: bf16 stays bf16 in HBM
    y = labels.reshape(b, 1, hw)          # native narrow int dtype stays narrow in HBM
    if not jnp.issubdtype(y.dtype, jnp.integer):
        y = y.astype(jnp.int32)           # tolerate float targets
    x_item = jnp.dtype(x.dtype).itemsize
    y_item = jnp.dtype(y.dtype).itemsize

    if n_shards is None:
        n_shards = _default_n_shards()
    n_shards = max(1, int(n_shards))

    # VMEM bytes per lane of tile: double-buffered x and y inputs + f32 scratch
    # accumulators (nll: B rows, presence: B*C rows).
    per_lane = 2 * (b * c * x_item + b * y_item) + 4 * (b + b * c)

    if tile_hw is None:
        t = (16 * 1024 * 1024) // per_lane        # ~16 MiB working-set budget
    else:
        t = int(tile_hw)
    t = max(128, _round_down(t, 128))
    t = min(t, 65536)                             # raised cap (was 16384)
    t = min(t, max(128, _round_down(hw, 128)))    # never larger than the lane extent
    if tile_hw is None:
        # Keep >= ~4 tiles per shard so the BlockSpec pipeline still overlaps.
        min_tiles = 4 * n_shards
        if _cdiv(hw, t) < min_tiles:
            t = max(512, _round_down(_cdiv(hw, min_tiles), 128))
            t = min(t, max(128, _round_down(hw, 128)))

    nt_total = _cdiv(hw, t)
    n_shards = min(n_shards, nt_total)
    nt_per = _cdiv(nt_total, n_shards)

    def in_idx(s, tt):
        # Clamp so padding steps of the shorter shard re-read a valid block;
        # their contribution is masked to zero inside the kernel.
        return (0, 0, jnp.minimum(s * nt_per + tt, nt_total - 1))

    kernel = functools.partial(_ce_presence_kernel, HW=hw,
                               compute_presence=bool(compute_presence))
    cost = pl.CostEstimate(
        flops=10 * b * c * hw,
        transcendentals=b * c * hw + b * hw,
        bytes_accessed=x.size * x_item + y.size * y_item + 4 * n_shards * (1 + b * c),
    )
    # Trim scoped VMEM to actual need (+slack) instead of a blanket 32 MiB.
    vmem_limit = int(min(max(per_lane * t + (2 << 20), 4 * 1024 * 1024),
                         32 * 1024 * 1024))

    loss_parts, pres_parts = pl.pallas_call(
        kernel,
        out_shape=(jax.ShapeDtypeStruct((n_shards, 1, 1), jnp.float32),
                   jax.ShapeDtypeStruct((n_shards, b, c), jnp.float32)),
        grid_spec=pltpu.PrefetchScalarGridSpec(
            num_scalar_prefetch=0,
            grid=(n_shards, nt_per),
            in_specs=[pl.BlockSpec((b, c, t), in_idx),
                      pl.BlockSpec((b, 1, t), in_idx)],
            out_specs=(pl.BlockSpec((1, 1, 1), lambda s, tt: (s, 0, 0)),
                       pl.BlockSpec((1, b, c), lambda s, tt: (s, 0, 0))),
            scratch_shapes=[pltpu.VMEM((b, 1, t), jnp.float32),
                            pltpu.VMEM((b, c, t), jnp.float32)],
        ),
        compiler_params=pltpu.CompilerParams(
            dimension_semantics=("parallel", "arbitrary"),
            vmem_limit_bytes=vmem_limit,
        ),
        cost_estimate=cost,
    )(x, y)

    mean_nll = jnp.sum(loss_parts) * jnp.float32(1.0 / (b * hw))
    presence = jnp.max(pres_parts, axis=0)                 # (B, C) in {0, 1}
    return mean_nll, presence


# ----------------------------------------------------------------------------- #
# Plain-JAX paths for tiny levels / tiny per-sample math (launch overhead dominated)
# ----------------------------------------------------------------------------- #
def _ce_jax(logits, labels):
    x = logits.astype(jnp.float32)
    logp = jax.nn.log_softmax(x, axis=1)
    nll = -jnp.take_along_axis(logp, labels.astype(jnp.int32), axis=1)
    return jnp.mean(nll)


def _presence_jax(labels, num_classes):
    b = labels.shape[0]
    lb = labels.reshape(b, -1).astype(jnp.int32)
    cls = jnp.arange(num_classes, dtype=jnp.int32)
    return jnp.max((lb[:, :, None] == cls[None, None, :]).astype(jnp.float32), axis=1)


def _mlc_loss_from_presence(mlc_output, presence):
    x = mlc_output.astype(jnp.float32)
    p = presence.astype(jnp.float32)
    return jnp.mean(-(p * jax.nn.log_sigmoid(x) + (1.0 - p) * jax.nn.log_sigmoid(-x)))


# ----------------------------------------------------------------------------- #
# Public wrapper == DeepSupervisionWrapperV2.forward
# ----------------------------------------------------------------------------- #
def deep_supervision_wrapper_v2(seg_outputs, targets, weight_factors=None, mlc_output=None,
                                *, min_pallas_hw=32768, tile_hw=None, n_shards=None):
    """seg_outputs: list of [B, C, *spatial] logits; targets: list of [B, 1, *spatial] labels."""
    assert all(isinstance(i, (tuple, list)) for i in (seg_outputs, targets)), \
        'seg_outputs and targets must be tuple or list'
    assert len(seg_outputs) == len(targets)
    if weight_factors is None:
        weights = (1.0,) * len(seg_outputs)
    else:
        weights = tuple(weight_factors)
        assert any(w != 0 for w in weights), 'At least one weight factor should be != 0.0'

    need_presence = mlc_output is not None
    nc = mlc_output.shape[-1] if need_presence else None

    seg_loss = jnp.float32(0.0)
    presence = None
    for i, (logits, tgt) in enumerate(zip(seg_outputs, targets)):
        w = weights[i]
        if w == 0.0:
            continue
        c = logits.shape[1]
        hw = math.prod(logits.shape[2:])
        use_pallas = hw >= max(int(min_pallas_hw), 128)
        if use_pallas:
            fuse_presence = (i == 0) and need_presence and (nc == c)
            lvl_loss, lvl_pres = _ce_presence_pallas(
                logits, tgt, tile_hw=tile_hw, n_shards=n_shards,
                compute_presence=fuse_presence)
            if fuse_presence:
                presence = lvl_pres          # fused: one read of the full-res labels
        else:
            lvl_loss = _ce_jax(logits, tgt)  # tiny level: Pallas step overhead dominates
        seg_loss = seg_loss + jnp.float32(w) * lvl_loss

    if need_presence:
        if presence is None:
            presence = _presence_jax(targets[0], nc)
        cls_loss = _mlc_loss_from_presence(mlc_output, presence)
    else:
        cls_loss = jnp.float32(0.0)

    return seg_loss + cls_loss


# ----------------------------------------------------------------------------- #
# Pure-JAX reference (sanity check)
# ----------------------------------------------------------------------------- #
def _reference(seg_outputs, targets, weight_factors, mlc_output):
    total = jnp.float32(0.0)
    for i, (logits, tgt) in enumerate(zip(seg_outputs, targets)):
        w = weight_factors[i]
        if w == 0.0:
            continue
        logp = jax.nn.log_softmax(logits.astype(jnp.float32), axis=1)
        lb = tgt[:, 0].astype(jnp.int32)
        nll = -jnp.take_along_axis(logp, lb[:, None], axis=1)[:, 0]
        total = total + jnp.float32(w) * jnp.mean(nll)

    if mlc_output is not None:
        x = mlc_output.astype(jnp.float32)
        b, nc = x.shape
        lb = targets[0].reshape(b, -1).astype(jnp.int32)
        present = jnp.max(
            (lb[:, None, :] == jnp.arange(nc, dtype=jnp.int32)[None, :, None]).astype(jnp.float32),
            axis=2,
        )
        total = total + jnp.mean(-(present * jax.nn.log_sigmoid(x)
                                   + (1.0 - present) * jax.nn.log_sigmoid(-x)))
    return total


# ----------------------------------------------------------------------------- #
# Main
# ----------------------------------------------------------------------------- #
if __name__ == "__main__":
    key = jax.random.PRNGKey(0)
    B, C = 2, 4
    sizes = [24, 12, 6]                      # deep-supervision resolutions
    weight_factors = (1.0, 0.5, 0.0)         # last level ignored (weight == 0)

    seg_outputs, targets = [], []
    for s in sizes:
        key, k1, k2 = jax.random.split(key, 3)
        seg_outputs.append(jax.random.normal(k1, (B, C, s, s), dtype=jnp.float32))
        targets.append(jax.random.randint(k2, (B, 1, s, s), 0, C, dtype=jnp.int32))

    key, kc = jax.random.split(key)
    mlc_output = jax.random.normal(kc, (B, C), dtype=jnp.float32)

    # Check 1: f32 logits, int32 labels; min_pallas_hw lowered so the 24x24 level
    # (HW=576) runs through the Pallas kernel with forced 128-lane tiles and an
    # explicit 2-shard split -> grid (2, 3), exercising masked tail tiles and the
    # clamped padding tile.  The 12x12 level takes the pure-JAX small-level path;
    # the 6x6 level is skipped (weight 0).
    loss = deep_supervision_wrapper_v2(seg_outputs, targets, weight_factors, mlc_output,
                                       min_pallas_hw=256, tile_hw=128, n_shards=2)
    loss = jax.block_until_ready(loss)
    ref = jax.block_until_ready(_reference(seg_outputs, targets, weight_factors, mlc_output))
    assert jnp.allclose(loss, ref, rtol=1e-5, atol=1e-5), (loss, ref)

    # Check 2: bf16 logits and int8 labels stay narrow in HBM (widened in-register
    # inside the kernel); auto-chosen tile size and hardware-aware shard count.
    seg_bf16 = [seg_outputs[0].astype(jnp.bfloat16)] + list(seg_outputs[1:])
    tgt_i8 = [t.astype(jnp.int8) for t in targets]
    loss_bf16 = deep_supervision_wrapper_v2(seg_bf16, tgt_i8, weight_factors, mlc_output,
                                            min_pallas_hw=256)
    loss_bf16 = jax.block_until_ready(loss_bf16)
    ref_bf16 = jax.block_until_ready(_reference(seg_bf16, tgt_i8, weight_factors, mlc_output))
    assert jnp.allclose(loss_bf16, ref_bf16, rtol=1e-5, atol=1e-5), (loss_bf16, ref_bf16)

    print("KERNEL_OK")
</pallas_src>

<mosaic_0001>
module attributes {stable_mosaic.version = 11 : i64} {
  func.func @_ce_presence_kernel(%arg0: i32, %arg1: i32, %arg2: memref<2x4x128xf32, #tpu.memory_space<vmem>>, %arg3: memref<2x1x128xi32, #tpu.memory_space<vmem>>, %arg4: memref<1x1x1xf32, #tpu.memory_space<vmem>>, %arg5: memref<1x2x4xf32, #tpu.memory_space<vmem>>, %arg6: memref<2x1x128xf32, #tpu.memory_space<vmem>>, %arg7: memref<2x4x128xf32, #tpu.memory_space<vmem>>) attributes {dimension_semantics = [#tpu.dimension_semantics<parallel>, #tpu.dimension_semantics<arbitrary>], iteration_bounds = array<i64: 2, 3>, scalar_prefetch = 0 : i64, scratch_operands = 2 : i64, tpu.core_type = #tpu.core_type<tc>, window_params = [{transform_indices = @transform_0, window_bounds = array<i64: 2, 4, 128>}, {transform_indices = @transform_1, window_bounds = array<i64: 2, 1, 128>}, {transform_indices = @transform_2, window_bounds = array<i64: 1, 1, 1>}, {transform_indices = @transform_3, window_bounds = array<i64: 1, 2, 4>}]} {
    %c0_i32 = arith.constant 0 : i32
    %0 = arith.cmpi eq, %arg1, %c0_i32 : i32
    %1 = arith.extui %0 : i1 to i32
    %c0_i32_0 = arith.constant 0 : i32
    %2 = arith.cmpi ne, %1, %c0_i32_0 : i32
    scf.if %2 {
      %cst_25 = arith.constant 0.000000e+00 : f32
      %48 = vector.broadcast %cst_25 : f32 to vector<2x1x128xf32>
      %c0_26 = arith.constant 0 : index
      %c0_27 = arith.constant 0 : index
      %c0_28 = arith.constant 0 : index
      %49 = vector.load %arg6[%c0_26, %c0_27, %c0_28] : memref<2x1x128xf32, #tpu.memory_space<vmem>>, vector<2x1x128xf32>
      tpu.vector_store %arg6[%c0_26, %c0_27, %c0_28], %48 {strides = array<i32>} : memref<2x1x128xf32, #tpu.memory_space<vmem>>, vector<2x1x128xf32>,
      %cst_29 = arith.constant 0.000000e+00 : f32
      %50 = vector.broadcast %cst_29 : f32 to vector<2x4x128xf32>
      %c0_30 = arith.constant 0 : index
      %c0_31 = arith.constant 0 : index
      %c0_32 = arith.constant 0 : index
      %51 = vector.load %arg7[%c0_30, %c0_31, %c0_32] : memref<2x4x128xf32, #tpu.memory_space<vmem>>, vector<2x4x128xf32>
      tpu.vector_store %arg7[%c0_30, %c0_31, %c0_32], %50 {strides = array<i32>} : memref<2x4x128xf32, #tpu.memory_space<vmem>>, vector<2x4x128xf32>,
    } else {
    }
    %c3_i32 = arith.constant 3 : i32
    %3 = arith.muli %arg0, %c3_i32 : i32
    %4 = arith.addi %3, %arg1 : i32
    %c128_i32 = arith.constant 128 : i32
    %5 = arith.muli %4, %c128_i32 : i32
    %6 = tpu.iota {dimensions = array<i32: 2>} : vector<1x1x128xi32>
    %7 = vector.broadcast %5 : i32 to vector<1x1x128xi32>
    %8 = arith.addi %7, %6 : vector<1x1x128xi32>
    %c576_i32 = arith.constant 576 : i32
    %9 = vector.broadcast %c576_i32 : i32 to vector<1x1x128xi32>
    %10 = arith.cmpi slt, %8, %9 : vector<1x1x128xi32>
    %c0 = arith.constant 0 : index
    %c0_1 = arith.constant 0 : index
    %c0_2 = arith.constant 0 : index
    %11 = vector.load %arg2[%c0, %c0_1, %c0_2] : memref<2x4x128xf32, #tpu.memory_space<vmem>>, vector<2x4x128xf32>
    %c0_3 = arith.constant 0 : index
    %c0_4 = arith.constant 0 : index
    %c0_5 = arith.constant 0 : index
    %12 = vector.load %arg3[%c0_3, %c0_4, %c0_5] : memref<2x1x128xi32, #tpu.memory_space<vmem>>, vector<2x1x128xi32>
    %13 = tpu.iota {dimensions = array<i32: 1>} : vector<2x4x128xi32>
    %14 = vector.broadcast %12 : vector<2x1x128xi32> to vector<2x4x128xi32>
    %15 = arith.cmpi eq, %13, %14 : vector<2x4x128xi32>
    %cst = arith.constant dense<0xFF800000> : vector<2x128xf32>
    %16 = vector.multi_reduction <maximumf>, %11, %cst [1] : vector<2x4x128xf32> to vector<2x128xf32>
    %17 = vector.shape_cast %16 : vector<2x128xf32> to vector<2x1x128xf32>
    %18 = vector.broadcast %17 : vector<2x1x128xf32> to vector<2x4x128xf32>
    %19 = arith.subf %11, %18 : vector<2x4x128xf32>
    %20 = math.exp %19 : vector<2x4x128xf32>
    %cst_6 = arith.constant dense<0.000000e+00> : vector<2x128xf32>
    %21 = vector.multi_reduction <add>, %20, %cst_6 [1] : vector<2x4x128xf32> to vector<2x128xf32>
    %22 = vector.shape_cast %21 : vector<2x128xf32> to vector<2x1x128xf32>
    %cst_7 = arith.constant 0.000000e+00 : f32
    %23 = vector.broadcast %cst_7 : f32 to vector<2x4x128xf32>
    %24 = arith.select %15, %11, %23 : vector<2x4x128xi1>, vector<2x4x128xf32>
    %cst_8 = arith.constant dense<0.000000e+00> : vector<2x128xf32>
    %25 = vector.multi_reduction <add>, %24, %cst_8 [1] : vector<2x4x128xf32> to vector<2x128xf32>
    %26 = vector.shape_cast %25 : vector<2x128xf32> to vector<2x1x128xf32>
    %27 = math.log %22 : vector<2x1x128xf32>
    %28 = arith.addf %17, %27 : vector<2x1x128xf32>
    %29 = arith.subf %28, %26 : vector<2x1x128xf32>
    %c0_9 = arith.constant 0 : index
    %c0_10 = arith.constant 0 : index
    %c0_11 = arith.constant 0 : index
    %30 = vector.load %arg6[%c0_9, %c0_10, %c0_11] : memref<2x1x128xf32, #tpu.memory_space<vmem>>, vector<2x1x128xf32>
    %cst_12 = arith.constant 0.000000e+00 : f32
    %31 = vector.shape_cast %10 : vector<1x1x128xi1> to vector<1x1x128xi1>
    %32 = vector.broadcast %31 : vector<1x1x128xi1> to vector<2x1x128xi1>
    %33 = vector.broadcast %cst_12 : f32 to vector<2x1x128xf32>
    %34 = arith.select %32, %29, %33 : vector<2x1x128xi1>, vector<2x1x128xf32>
    %35 = arith.addf %30, %34 : vector<2x1x128xf32>
    %c0_13 = arith.constant 0 : index
    %c0_14 = arith.constant 0 : index
    %c0_15 = arith.constant 0 : index
    %36 = vector.load %arg6[%c0_13, %c0_14, %c0_15] : memref<2x1x128xf32, #tpu.memory_space<vmem>>, vector<2x1x128xf32>
    tpu.vector_store %arg6[%c0_13, %c0_14, %c0_15], %35 {strides = array<i32>} : memref<2x1x128xf32, #tpu.memory_space<vmem>>, vector<2x1x128xf32>,
    %c0_16 = arith.constant 0 : index
    %c0_17 = arith.constant 0 : index
    %c0_18 = arith.constant 0 : index
    %37 = vector.load %arg7[%c0_16, %c0_17, %c0_18] : memref<2x4x128xf32, #tpu.memory_space<vmem>>, vector<2x4x128xf32>
    %38 = vector.broadcast %10 : vector<1x1x128xi1> to vector<2x4x128xi1>
    %39 = arith.andi %38, %15 : vector<2x4x128xi1>
    %cst_19 = arith.constant 1.000000e+00 : f32
    %cst_20 = arith.constant 0.000000e+00 : f32
    %40 = vector.broadcast %cst_19 : f32 to vector<2x4x128xf32>
    %41 = vector.broadcast %cst_20 : f32 to vector<2x4x128xf32>
    %42 = arith.select %39, %40, %41 : vector<2x4x128xi1>, vector<2x4x128xf32>
    %43 = arith.maximumf %37, %42 : vector<2x4x128xf32>
    %c0_21 = arith.constant 0 : index
    %c0_22 = arith.constant 0 : index
    %c0_23 = arith.constant 0 : index
    %44 = vector.load %arg7[%c0_21, %c0_22, %c0_23] : memref<2x4x128xf32, #tpu.memory_space<vmem>>, vector<2x4x128xf32>
    tpu.vector_store %arg7[%c0_21, %c0_22, %c0_23], %43 {strides = array<i32>} : memref<2x4x128xf32, #tpu.memory_space<vmem>>, vector<2x4x128xf32>,
    %c2_i32 = arith.constant 2 : i32
    %45 = arith.cmpi eq, %arg1, %c2_i32 : i32
    %46 = arith.extui %45 : i1 to i32
    %c0_i32_24 = arith.constant 0 : i32
    %47 = arith.cmpi ne, %46, %c0_i32_24 : i32
    scf.if %47 {
      %c0_25 = arith.constant 0 : index
      %c0_26 = arith.constant 0 : index
      %c0_27 = arith.constant 0 : index
      %48 = vector.load %arg6[%c0_25, %c0_26, %c0_27] : memref<2x1x128xf32, #tpu.memory_space<vmem>>, vector<2x1x128xf32>
      %49 = vector.shape_cast %48 : vector<2x1x128xf32> to vector<1x2x1x128xf32>
      %cst_28 = arith.constant dense<0.000000e+00> : vector<1xf32>
      %50 = vector.multi_reduction <add>, %49, %cst_28 [1, 2, 3] : vector<1x2x1x128xf32> to vector<1xf32>
      %51 = vector.shape_cast %50 : vector<1xf32> to vector<1x1x1x1xf32>
      %52 = vector.extract %51[0, 0, 0, 0] : f32 from vector<1x1x1x1xf32>
      %53 = vector.broadcast %52 : f32 to vector<1x1x1xf32>
      %c0_29 = arith.constant 0 : index
      %c0_30 = arith.constant 0 : index
      %c0_31 = arith.constant 0 : index
      %54 = vector.load %arg4[%c0_29, %c0_30, %c0_31] : memref<1x1x1xf32, #tpu.memory_space<vmem>>, vector<1x1x1xf32>
      tpu.vector_store %arg4[%c0_29, %c0_30, %c0_31], %53 {strides = array<i32>} : memref<1x1x1xf32, #tpu.memory_space<vmem>>, vector<1x1x1xf32>,
      %c0_32 = arith.constant 0 : index
      %c0_33 = arith.constant 0 : index
      %c0_34 = arith.constant 0 : index
      %55 = vector.load %arg7[%c0_32, %c0_33, %c0_34] : memref<2x4x128xf32, #tpu.memory_space<vmem>>, vector<2x4x128xf32>
      %cst_35 = arith.constant dense<0xFF800000> : vector<2x4xf32>
      %56 = vector.multi_reduction <maximumf>, %55, %cst_35 [2] : vector<2x4x128xf32> to vector<2x4xf32>
      %57 = vector.shape_cast %56 : vector<2x4xf32> to vector<1x2x4xf32>
      %c0_36 = arith.constant 0 : index
      %c0_37 = arith.constant 0 : index
      %c0_38 = arith.constant 0 : index
      %58 = vector.load %arg5[%c0_36, %c0_37, %c0_38] : memref<1x2x4xf32, #tpu.memory_space<vmem>>, vector<1x2x4xf32>
      tpu.vector_store %arg5[%c0_36, %c0_37, %c0_38], %57 {strides = array<i32>} : memref<1x2x4xf32, #tpu.memory_space<vmem>>, vector<1x2x4xf32>,
    } else {
    }
    return
  }
  func.func @transform_0(%arg0: i32, %arg1: i32) -> (i32, i32, i32) {
    %c3_i32 = arith.constant 3 : i32
    %0 = arith.muli %arg0, %c3_i32 : i32
    %1 = arith.addi %0, %arg1 : i32
    %c4_i32 = arith.constant 4 : i32
    %2 = arith.minsi %1, %c4_i32 : i32
    %c0_i32 = arith.constant 0 : i32
    %c0_i32_0 = arith.constant 0 : i32
    %c0_i32_1 = arith.constant 0 : i32
    return %c0_i32, %c0_i32_0, %2 : i32, i32, i32
  }
  func.func @transform_1(%arg0: i32, %arg1: i32) -> (i32, i32, i32) {
    %c3_i32 = arith.constant 3 : i32
    %0 = arith.muli %arg0, %c3_i32 : i32
    %1 = arith.addi %0, %arg1 : i32
    %c4_i32 = arith.constant 4 : i32
    %2 = arith.minsi %1, %c4_i32 : i32
    %c0_i32 = arith.constant 0 : i32
    %c0_i32_0 = arith.constant 0 : i32
    %c0_i32_1 = arith.constant 0 : i32
    return %c0_i32, %c0_i32_0, %2 : i32, i32, i32
  }
  func.func @transform_2(%arg0: i32, %arg1: i32) -> (i32, i32, i32) {
    %c0_i32 = arith.constant 0 : i32
    %c0_i32_0 = arith.constant 0 : i32
    %c0_i32_1 = arith.constant 0 : i32
    return %arg0, %c0_i32, %c0_i32_0 : i32, i32, i32
  }
  func.func @transform_3(%arg0: i32, %arg1: i32) -> (i32, i32, i32) {
    %c0_i32 = arith.constant 0 : i32
    %c0_i32_0 = arith.constant 0 : i32
    %c0_i32_1 = arith.constant 0 : i32
    return %arg0, %c0_i32, %c0_i32_0 : i32, i32, i32
  }
}

</mosaic_0001>

<llo_original>
// kernel: tpu_custom_call.1
$region0: #{tpu_custom_call.1}
  #allocation0 [shape = 'u32[]', space=smem, size = 0x4, offset = 0x4, fixed_abs, tag = 'smem constant byte address 0x4 - core index']
  #allocation1 [shape = 'u32[144,128]{1,0:T(1,128)}', space=vmem, size = 0x12000, scoped, tag = 'internal scratch']
  #allocation2 [shape = 'f32[2,1,128]{2,1,0:T(1,128)}', space=vmem, size = 0x400, scoped, tag = 'scratch operand']
  #allocation3 [shape = 'f32[2,4,128]{2,1,0:T(4,128)}', space=vmem, size = 0x1000, scoped, tag = 'scratch operand']
  %s0 = inlined_call_operand.hbm [shape: f32[2,4,576], index: 0, kind: input, shape index: {}]
  %s1 = inlined_call_operand.hbm [shape: s32[2,1,576], index: 1, kind: input, shape index: {}]
  %s2 = inlined_call_operand.vmem [shape: f32[2,1,1], index: 2, kind: output, shape index: {0}]
  %s3 = inlined_call_operand.hbm [shape: f32[2,2,4], index: 3, kind: output, shape index: {1}]
  %4 = xla_tuple %s2, %s3
  %s5 = sld [smem:[#allocation0]]
  $region65: #{tpu_custom_call.1} parent=0
    _
  %s7 = ssub.s32 1, %s5
  %s8 = scalar_select 0, %s7, %s5
  $region1: #{tpu_custom_call.1} parent=0
    #allocation4 [shape = 'u8[8192]{0}', space=vmem, size = 0x2000, scoped, tag = 'input window, operand 0']
    #allocation5 [shape = 's32[2]{0}', space=sflag, size = 0x8, scoped, tag = 'scoped memory for tpu_custom_call.1']
    #allocation6 [shape = 's32[2]{0}', space=sflag, size = 0x8, scoped, tag = 'scoped memory for tpu_custom_call.1']
    #allocation7 [shape = 'u8[2048]{0}', space=vmem, size = 0x800, scoped, tag = 'input window, operand 1']
    #allocation8 [shape = 's32[2]{0}', space=sflag, size = 0x8, scoped, tag = 'scoped memory for tpu_custom_call.1']
    #allocation9 [shape = 'u8[2048]{0}', space=vmem, size = 0x800, scoped, tag = 'output window, operand 1']
    %9 = vsyncpa [#allocation5], 0
    %s10 = scalar_lea.sflag [#allocation5], 1
    %11 = vsyncpa %s10, 0
    %12 = vsyncpa [#allocation8], 0
    %s13 = scalar_lea.sflag [#allocation8], 1
    %14 = vsyncpa %s13, 0
    %15 = vsyncpa [#allocation6], 0
    %s16 = scalar_lea.sflag [#allocation6], 1
    %17 = vsyncpa %s16, 0
    loop: start=0, step=1, limit=8
    $region2: #{tpu_custom_call.1} parent=1 // loop_pre_header
      _
    $region3: #{tpu_custom_call.1} parent=1 // loop_header
      %s19 = sphi 0, %s23
      %p20 = scmp.ge.s32.totalorder %s19, 8
      %s26 = sphi 0, %s38
      %s27 = sphi 0, %s34
      %s28 = sphi 0, %s26
      %s29 = sphi 0, %s27
      %s30 = sphi 0, %s28
      %s31 = sphi 0, %s29
      %s49 = sphi 0, %s51
      %s52 = sphi 0, %s49
      %s53 = sphi 0, %s52
      %s69 = sphi 0, %s53
      %s83 = sphi 0, %s85
      %s86 = sphi 0, %s83
      %s87 = sphi 0, %s86
      %s103 = sphi 0, %s87
      %s109 = sphi 0, %s111
      %s112 = sphi 0, %s109
      %s113 = sphi 0, %s112
      %s129 = sphi 0, %s113
      %s135 = sphi 0, %s137
      %s138 = sphi 0, %s135
      %s139 = sphi 0, %s138
      %s155 = sphi 0, %s139
    $region4: #{tpu_custom_call.1} parent=1 // loop_header_branch
      %22 = sbr.rel (%p20) target = $region8
    $region5: #{tpu_custom_call.1} parent=1 // loop_body
      %s24 = ssub.s32 %s19, 1
      %s25 = ssub.s32 %s19, 2
      %s32 = sadd.s32 1, %s27
      %p33 = scmp.ge.s32.totalorder %s32, 3
      %s34 = scalar_select %p33, 0, %s32
      %s35 = sadd.s32 1, %s26
      %s36 = scalar_select %p33, %s35, %s26
      %p37 = scmp.ge.s32.totalorder %s36, 2
      %s38 = scalar_select %p37, 0, %s36
      %s39 = smul.u32 %s26, 3
      %s40 = sadd.s32 %s39, %s27
      %p41 = scmp.lt.s32.totalorder %s40, 4
      %s42 = scalar_select %p41, %s40, 4
      %s43 = smul.u32 %s38, 3
      %s44 = sadd.s32 %s43, %s34
      %p45 = scmp.lt.s32.totalorder %s44, 4
      %s46 = scalar_select %p45, %s44, 4
      %s47 = ssub.s32 %s42, %s46
      %p48 = scmp.eq.s32.totalorder %s47, 0
      %s50 = sadd.s32 %s49, 1
      %s51 = scalar_select %p48, %s49, %s50
      %p54 = pneg %p48
      %p55 = scmp.eq.s32.totalorder %s19, 5
      %p56 = por %p54, %p55
      %p57 = scmp.ne.s32.totalorder %s49, %s52
      %p58 = scmp.eq.s32.totalorder %s19, 0
      %p59 = por %p57, %p58
      %p60 = scmp.ne.s32.totalorder %s49, %s52
      %p61 = scmp.eq.s32.totalorder %s24, 5
      %p62 = por %p60, %p61
      %p63 = scmp.ne.s32.totalorder %s52, %s53
      %p64 = scmp.eq.s32.totalorder %s24, 0
      %p65 = por %p63, %p64
      %p66 = scmp.ne.s32.totalorder %s52, %s53
      %p67 = scmp.eq.s32.totalorder %s25, 5
      %p68 = por %p66, %p67
      %p70 = scmp.ne.s32.totalorder %s53, %s69
      %p71 = scmp.eq.s32.totalorder %s25, 0
      %p72 = por %p70, %p71
      %s73 = smul.u32 %s26, 3
      %s74 = sadd.s32 %s73, %s27
      %p75 = scmp.lt.s32.totalorder %s74, 4
      %s76 = scalar_select %p75, %s74, 4
      %s77 = smul.u32 %s38, 3
      %s78 = sadd.s32 %s77, %s34
      %p79 = scmp.lt.s32.totalorder %s78, 4
      %s80 = scalar_select %p79, %s78, 4
      %s81 = ssub.s32 %s76, %s80
      %p82 = scmp.eq.s32.totalorder %s81, 0
      %s84 = sadd.s32 %s83, 1
      %s85 = scalar_select %p82, %s83, %s84
      %p88 = pneg %p82
      %p89 = scmp.eq.s32.totalorder %s19, 5
      %p90 = por %p88, %p89
      %p91 = scmp.ne.s32.totalorder %s83, %s86
      %p92 = scmp.eq.s32.totalorder %s19, 0
      %p93 = por %p91, %p92
      %p94 = scmp.ne.s32.totalorder %s83, %s86
      %p95 = scmp.eq.s32.totalorder %s24, 5
      %p96 = por %p94, %p95
      %p97 = scmp.ne.s32.totalorder %s86, %s87
      %p98 = scmp.eq.s32.totalorder %s24, 0
      %p99 = por %p97, %p98
      %p100 = scmp.ne.s32.totalorder %s86, %s87
      %p101 = scmp.eq.s32.totalorder %s25, 5
      %p102 = por %p100, %p101
      %p104 = scmp.ne.s32.totalorder %s87, %s103
      %p105 = scmp.eq.s32.totalorder %s25, 0
      %p106 = por %p104, %p105
      %s107 = ssub.s32 %s26, %s38
      %p108 = scmp.eq.s32.totalorder %s107, 0
      %s110 = sadd.s32 %s109, 1
      %s111 = scalar_select %p108, %s109, %s110
      %p114 = pneg %p108
      %p115 = scmp.eq.s32.totalorder %s19, 5
      %p116 = por %p114, %p115
      %p117 = scmp.ne.s32.totalorder %s109, %s112
      %p118 = scmp.eq.s32.totalorder %s19, 0
      %p119 = por %p117, %p118
      %p120 = scmp.ne.s32.totalorder %s109, %s112
      %p121 = scmp.eq.s32.totalorder %s24, 5
      %p122 = por %p120, %p121
      %p123 = scmp.ne.s32.totalorder %s112, %s113
      %p124 = scmp.eq.s32.totalorder %s24, 0
      %p125 = por %p123, %p124
      %p126 = scmp.ne.s32.totalorder %s112, %s113
      %p127 = scmp.eq.s32.totalorder %s25, 5
      %p128 = por %p126, %p127
      %p130 = scmp.ne.s32.totalorder %s113, %s129
      %p131 = scmp.eq.s32.totalorder %s25, 0
      %p132 = por %p130, %p131
      %s133 = ssub.s32 %s26, %s38
      %p134 = scmp.eq.s32.totalorder %s133, 0
      %s136 = sadd.s32 %s135, 1
      %s137 = scalar_select %p134, %s135, %s136
      %p140 = pneg %p134
      %p141 = scmp.eq.s32.totalorder %s19, 5
      %p142 = por %p140, %p141
      %p143 = scmp.ne.s32.totalorder %s135, %s138
      %p144 = scmp.eq.s32.totalorder %s19, 0
      %p145 = por %p143, %p144
      %p146 = scmp.ne.s32.totalorder %s135, %s138
      %p147 = scmp.eq.s32.totalorder %s24, 5
      %p148 = por %p146, %p147
      %p149 = scmp.ne.s32.totalorder %s138, %s139
      %p150 = scmp.eq.s32.totalorder %s24, 0
      %p151 = por %p149, %p150
      %p152 = scmp.ne.s32.totalorder %s138, %s139
      %p153 = scmp.eq.s32.totalorder %s25, 5
      %p154 = por %p152, %p153
      %p156 = scmp.ne.s32.totalorder %s139, %s155
      %p157 = scmp.eq.s32.totalorder %s25, 0
      %p158 = por %p156, %p157
      %p159 = scmp.le.s32.totalorder 1, %s19
      %p160 = scmp.lt.s32.totalorder %s19, 7
      %p161 = pnand %p159, %p160
      %p162 = pneg %p161
      // Predicated region
      $region9: #{tpu_custom_call.1} parent=5 // pred_check
        _
      $region10: #{tpu_custom_call.1} parent=5 // pred_check_branch
        %164 = sbr.rel (%p161) target = $region12
      $region11: #{tpu_custom_call.1} parent=5 // pred_region
        %s165 = ssub.s32 %s19, 1
      $region12: #{tpu_custom_call.1} parent=5 // pred_fallthru
        _
      %p166 = scmp.lt.s32.totalorder %s19, 6
      // Predicated region
      $region13: #{tpu_custom_call.1} parent=5 // pred_check
        %p167 = pneg %p166
      $region14: #{tpu_custom_call.1} parent=5 // pred_check_branch
        %169 = sbr.rel (%p167) target = $region16
      $region15: #{tpu_custom_call.1} parent=5 // pred_region
        // Predicated region
        $region17: #{tpu_custom_call.1} parent=15 // pred_check
          %p170 = pneg %p59
        $region18: #{tpu_custom_call.1} parent=15 // pred_check_branch
          %172 = sbr.rel (%p170) target = $region20
        $region19: #{tpu_custom_call.1} parent=15 // pred_region
          %s173 = sand.u32 %s49, 1
          %s174 = scalar_lea.sflag [#allocation5], %s173
          %s175 = sand.u32 %s49, 1
          %s176 = smul.addr %s175, 8
          %s177 = scalar_lea.vmem [#allocation4], %s176
          %s178 = smul.u32 %s26, 3
          %s179 = sadd.s32 %s178, %s27
          %p180 = scmp.lt.s32.totalorder %s179, 4
          %s181 = scalar_select %p180, %s179, 4
          %s183 = ssub.s32 128, 128
          %184 = vsyncadd %s174, %s183
          %s185 = smul.addr %s181, 64
          %s186 = scalar_lea.hbm %s0, %s185
          %s187 = sshll.u32 %s177, 4
          %s188 = int_to_ptr.vmem [resolvable:$true] %s187
          %193 = dma.hbm_to_vmem [thread:$0]  %s186, 128, %s188, %s174, 320, 64, 4
        $region20: #{tpu_custom_call.1} parent=15 // pred_fallthru
          _
        // Predicated region
        $region21: #{tpu_custom_call.1} parent=15 // pred_check
          %p194 = pneg %p93
        $region22: #{tpu_custom_call.1} parent=15 // pred_check_branch
          %196 = sbr.rel (%p194) target = $region24
        $region23: #{tpu_custom_call.1} parent=15 // pred_region
          %s197 = sand.u32 %s83, 1
          %s198 = scalar_lea.sflag [#allocation8], %s197
          %s199 = sand.u32 %s83, 1
          %s200 = smul.addr %s199, 2
          %s201 = scalar_lea.vmem [#allocation7], %s200
          %s202 = smul.u32 %s26, 3
          %s203 = sadd.s32 %s202, %s27
          %p204 = scmp.lt.s32.totalorder %s203, 4
          %s205 = scalar_select %p204, %s203, 4
          %s207 = ssub.s32 32, 32
          %208 = vsyncadd %s198, %s207
          %s209 = smul.addr %s205, 16
          %s210 = scalar_lea.hbm %s1, %s209
          %s211 = sshll.u32 %s201, 4
          %s212 = int_to_ptr.vmem [resolvable:$true] %s211
          %217 = dma.hbm_to_vmem [thread:$0]  %s210, 32, %s212, %s198, 80, 16, 1
        $region24: #{tpu_custom_call.1} parent=15 // pred_fallthru
          _
      $region16: #{tpu_custom_call.1} parent=5 // pred_fallthru
        _
      %p218 = scmp.le.s32.totalorder 1, %s19
      %p219 = scmp.lt.s32.totalorder %s19, 7
      %p220 = pnand %p218, %p219
      %p221 = pneg %p220
      // Predicated region
      $region25: #{tpu_custom_call.1} parent=5 // pred_check
        _
      $region26: #{tpu_custom_call.1} parent=5 // pred_check_branch
        %223 = sbr.rel (%p220) target = $region28
      $region27: #{tpu_custom_call.1} parent=5 // pred_region
        %s224 = ssub.s32 %s19, 1
        %s225 = sand.u32 %s52, 1
        %s226 = scalar_lea.sflag [#allocation5], %s225
        %s227 = sand.u32 %s52, 1
        %s228 = smul.addr %s227, 8
        %s229 = scalar_lea.vmem [#allocation4], %s228
        // Predicated region
        $region29: #{tpu_custom_call.1} parent=27 // pred_check
          %p230 = pneg %p65
        $region30: #{tpu_custom_call.1} parent=27 // pred_check_branch
          %232 = sbr.rel (%p230) target = $region32
        $region31: #{tpu_custom_call.1} parent=27 // pred_region
          %233 = dma.done %s226, 128
        $region32: #{tpu_custom_call.1} parent=27 // pred_fallthru
          _
        %s234 = sand.u32 %s86, 1
        %s235 = scalar_lea.sflag [#allocation8], %s234
        %s236 = sand.u32 %s86, 1
        %s237 = smul.addr %s236, 2
        %s238 = scalar_lea.vmem [#allocation7], %s237
        // Predicated region
        $region33: #{tpu_custom_call.1} parent=27 // pred_check
          %p239 = pneg %p99
        $region34: #{tpu_custom_call.1} parent=27 // pred_check_branch
          %241 = sbr.rel (%p239) target = $region36
        $region35: #{tpu_custom_call.1} parent=27 // pred_region
          %242 = dma.done %s235, 32
        $region36: #{tpu_custom_call.1} parent=27 // pred_fallthru
          _
        %s243 = sand.u32 %s52, 1
        %s244 = scalar_lea.sflag [#allocation5], %s243
        %s245 = sand.u32 %s52, 1
        %s246 = smul.addr %s245, 8
        %s247 = scalar_lea.vmem [#allocation4], %s246
        %p248 = pneg %p65
        %p249 = pneg %p62
        %s250 = sand.u32 %s86, 1
        %s251 = scalar_lea.sflag [#allocation8], %s250
        %s252 = sand.u32 %s86, 1
        %s253 = smul.addr %s252, 2
        %s254 = scalar_lea.vmem [#allocation7], %s253
        %p255 = pneg %p99
        %p256 = pneg %p96
        %p257 = pneg %p125
        %p258 = pneg %p122
        %p259 = scmp.lt.s32.totalorder %s28, 1
        %s260 = scalar_select %p259, %s28, 1
        %s261 = scalar_lea.vmem %s2, %s260
        %p262 = pneg %p151
        %p263 = pneg %p148
        %s264 = sand.u32 %s138, 1
        %s265 = scalar_lea.sflag [#allocation6], %s264
        %s266 = sand.u32 %s138, 1
        %s267 = smul.addr %s266, 2
        %s268 = scalar_lea.vmem [#allocation9], %s267
        %s269 = smul.u32 %s28, 3
        %s270 = sadd.s32 %s269, %s29
        %p271 = scmp.lt.s32.totalorder %s270, 4
        %s272 = scalar_select %p271, %s270, 4
        %s273 = smul.u32 %s28, 3
        %s274 = sadd.s32 %s273, %s29
        %p275 = scmp.lt.s32.totalorder %s274, 4
        %s276 = scalar_select %p275, %s274, 4
        %p277 = scmp.lt.s32.totalorder %s28, 1
        %s278 = scalar_select %p277, %s28, 1
        %s279 = scalar_lea.vmem %s2, %s278
        %p280 = scmp.eq.s32.totalorder %s29, 0
        // Predicated region
        $region37: #{tpu_custom_call.1} parent=27 // pred_check
          %p281 = pneg %p280
        $region38: #{tpu_custom_call.1} parent=27 // pred_check_branch
          %283 = sbr.rel (%p281) target = $region40
        $region39: #{tpu_custom_call.1} parent=27 // pred_region
          %284 = vst [vmem:[#allocation2] sm:$0x1] 0.0
          %285 = vst [vmem:[#allocation2 + $0x1] sm:$0x1] 0.0
          %286 = vst [vmem:[#allocation3] sm:$0xf] 0.0
          %287 = vst [vmem:[#allocation3 + $0x4] sm:$0xf] 0.0
        $region40: #{tpu_custom_call.1} parent=27 // pred_fallthru
          _
        %s288 = smul.u32 %s28, 3
        %s289 = sadd.s32 %s288, %s29
        %s290 = smul.u32 %s289, 128
        %v291 = vlaneseq
        %v292 = vand.u32 %v291, 127
        %v293 = vstv %s290
        %v294 = vadd.s32 %v293, %v292
        %vm295 = vcmp.lt.s32.totalorder %v294, 576
        %v296 = vld [vmem:[%s229] sm:$0xf]
        %v297 = vld [vmem:[%s229 + $0x4] sm:$0xf]
        %v298 = vld [vmem:[%s238] sm:$0x1]
        %v299 = vld [vmem:[%s238 + $0x1] sm:$0x1]
        %v300 = vlaneseq
        %v301 = vshrl.u32 %v300, 7
        %v302 = vlaneseq
        %v303 = vshrl.u32 %v302, 7
        %v304 = vsub.s32 0, %v303
        %v305 = vrot.slane %v298, %v304
        %v306 = vlaneseq
        %v307 = vshrl.u32 %v306, 7
        %v308 = vsub.s32 0, %v307
        %v309 = vrot.slane %v299, %v308
        %vm310 = vcmp.eq.s32.totalorder %v301, %v305
        %vm311 = vcmp.eq.s32.totalorder %v301, %v309
        %vm312 = vcmask 1043456
        %v313 = vsel %vm312, %v296, -inf
        %v314 = vrot.slane %v313, 4
        %v315 = vmax.f32 %v313, %v314
        %v316 = vrot.slane %v315, 2
        %v317 = vmax.f32 %v315, %v316
        %v318 = vrot.slane %v317, 1
        %v319 = vmax.f32 %v317, %v318
        %v320 = vsel %vm312, %v297, -inf
        %v321 = vrot.slane %v320, 4
        %v322 = vmax.f32 %v320, %v321
        %v323 = vrot.slane %v322, 2
        %v324 = vmax.f32 %v322, %v323
        %v325 = vrot.slane %v324, 1
        %v326 = vmax.f32 %v324, %v325
        %v327 = vsub.f32 %v296, %v319
        %v328 = vsub.f32 %v297, %v326
        %v329 = vmul.f32 %v327, 1.442695
        %v330 = vpow.pop %v329
        %v331 = vmul.f32 %v328, 1.442695
        %v332 = vpow.pop %v331
        %v333 = vsel %vm312, %v330, 0.0
        %v334 = vrot.slane %v333, 4
        %v335 = vadd.f32 %v333, %v334
        %v336 = vrot.slane %v335, 2
        %v337 = vadd.f32 %v335, %v336
        %v338 = vrot.slane %v337, 1
        %v339 = vadd.f32 %v337, %v338
        %v340 = vsel %vm312, %v332, 0.0
        %v341 = vrot.slane %v340, 4
        %v342 = vadd.f32 %v340, %v341
        %v343 = vrot.slane %v342, 2
        %v344 = vadd.f32 %v342, %v343
        %v345 = vrot.slane %v344, 1
        %v346 = vadd.f32 %v344, %v345
        %v347 = vsel %vm310, %v296, 0.0
        %v348 = vsel %vm311, %v297, 0.0
        %v349 = vsel %vm312, %v347, 0.0
        %v350 = vrot.slane %v349, 4
        %v351 = vadd.f32 %v349, %v350
        %v352 = vrot.slane %v351, 2
        %v353 = vadd.f32 %v351, %v352
        %v354 = vrot.slane %v353, 1
        %v355 = vadd.f32 %v353, %v354
        %v356 = vsel %vm312, %v348, 0.0
        %v357 = vrot.slane %v356, 4
        %v358 = vadd.f32 %v356, %v357
        %v359 = vrot.slane %v358, 2
        %v360 = vadd.f32 %v358, %v359
        %v361 = vrot.slane %v360, 1
        %v362 = vadd.f32 %v360, %v361
        %v363 = vlog2.pop %v339
        %v364 = vmul.f32 %v363, 0.6931472
        %v365 = vlog2.pop %v346
        %v366 = vmul.f32 %v365, 0.6931472
        %v367 = vadd.f32 %v319, %v364
        %v368 = vadd.f32 %v326, %v366
        %v369 = vsub.f32 %v367, %v355
        %v370 = vsub.f32 %v368, %v362
        %v371 = vld [vmem:[#allocation2] sm:$0x1]
        %v372 = vld [vmem:[#allocation2 + $0x1] sm:$0x1]
        %v373 = vsel %vm295, 1, 0
        %vm374 = vcmp.eq.s32.totalorder %v373, 1
        %v375 = vsel %vm374, %v369, 0.0
        %v376 = vsel %vm374, %v370, 0.0
        %v377 = vadd.f32 %v371, %v375
        %v378 = vadd.f32 %v372, %v376
        %379 = vst [vmem:[#allocation2] sm:$0x1] %v377
        %380 = vst [vmem:[#allocation2 + $0x1] sm:$0x1] %v378
        %v381 = vld [vmem:[#allocation3] sm:$0xf]
        %v382 = vld [vmem:[#allocation3 + $0x4] sm:$0xf]
        %vm383 = vmand %vm374, %vm310
        %vm384 = vmand %vm374, %vm311
        %v385 = vsel %vm383, 1.0, 0.0
        %v386 = vsel %vm384, 1.0, 0.0
        %v387 = vmax.f32 %v381, %v385
        %v388 = vmax.f32 %v382, %v386
        %389 = vst [vmem:[#allocation3] sm:$0xf] %v387
        %390 = vst [vmem:[#allocation3 + $0x4] sm:$0xf] %v388
        %p391 = scmp.eq.s32.totalorder %s29, 2
        // Predicated region
        $region41: #{tpu_custom_call.1} parent=27 // pred_check
          %p392 = pneg %p391
        $region42: #{tpu_custom_call.1} parent=27 // pred_check_branch
          %394 = sbr.rel (%p392) target = $region44
        $region43: #{tpu_custom_call.1} parent=27 // pred_region
          %v395 = vld [vmem:[#allocation2] sm:$0x1]
          %v396 = vld [vmem:[#allocation2 + $0x1] sm:$0x1]
          %vm397 = vcmask 1040384
          %v398 = vsel %vm397, %v395, 0.0
          %v399 = vsel %vm397, %v396, 0.0
          %v400 = vadd.f32 %v398, %v399
          %401 = vadd.xlane.f32.xlu0 %v400
          %v402 = vpop.xlane.xlu0 %401
          %v403 = vrot.slane %v402, 4
          %v404 = vadd.f32 %v402, %v403
          %v405 = vrot.slane %v404, 2
          %v406 = vadd.f32 %v404, %v405
          %v407 = vrot.slane %v406, 1
          %v408 = vadd.f32 %v406, %v407
          %s409 = vtos %v408
          %v410 = vstv %s409
          %vm411 = vcmask 0
          %412 = vst.msk [vmem:[%s279] sm:$0x1] %vm411, %v410
          %v413 = vld [vmem:[#allocation3] sm:$0xf]
          %v414 = vld [vmem:[#allocation3 + $0x4] sm:$0xf]
          %v415 = vsel %vm312, %v413, -inf
          %416 = vmax.xlane.f32.xlu0 %v415
          %v417 = vpop.xlane.xlu0 %416
          %v418 = vsel %vm312, %v414, -inf
          %419 = vmax.xlane.f32.xlu0 %v418
          %v420 = vpop.xlane.xlu0 %419
          %v423 = vlaneseq
          %v424 = vshrl.u32 %v423, 7
          %v425 = vsub.s32 %v292, %v424
          %v426 = vrot.slane %v417, %v425
          %v427 = vlaneseq
          %v428 = vshrl.u32 %v427, 7
          %v429 = vsub.s32 %v292, %v428
          %v430 = vrot.slane %v420, %v429
          %vm431 = vcmask 1041409
          %v432 = vsel %vm431, %v430, %v426
          %vm434 = vcmask 25600
          %435 = vst.msk [vmem:[%s268] sm:$0x3] %vm434, %v432
        $region44: #{tpu_custom_call.1} parent=27 // pred_fallthru
          _
        %p436 = scmp.lt.s32.totalorder %s28, 1
        %s437 = scalar_select %p436, %s28, 1
        %s438 = scalar_lea.vmem %s2, %s437
        %s439 = sand.u32 %s138, 1
        %s440 = scalar_lea.sflag [#allocation6], %s439
        %s441 = sand.u32 %s138, 1
        %s442 = smul.addr %s441, 2
        %s443 = scalar_lea.vmem [#allocation9], %s442
        // Predicated region
        $region45: #{tpu_custom_call.1} parent=27 // pred_check
          %p444 = pneg %p122
        $region46: #{tpu_custom_call.1} parent=27 // pred_check_branch
          %446 = sbr.rel (%p444) target = $region48
        $region47: #{tpu_custom_call.1} parent=27 // pred_region
          _
        $region48: #{tpu_custom_call.1} parent=27 // pred_fallthru
          _
        // Predicated region
        $region49: #{tpu_custom_call.1} parent=27 // pred_check
          %p447 = pneg %p148
        $region50: #{tpu_custom_call.1} parent=27 // pred_check_branch
          %449 = sbr.rel (%p447) target = $region52
        $region51: #{tpu_custom_call.1} parent=27 // pred_region
          %s451 = ssub.s32 32, 32
          %452 = vsyncadd %s440, %s451
          %s453 = smul.addr %s28, 32
          %s454 = scalar_lea.hbm %s3, %s453
          %s456 = sshll.u32 %s443, 4
          %s457 = int_to_ptr.vmem [resolvable:$true] %s456
          %459 = dma.vmem_to_hbm [thread:$0]  %s457, 32, %s454, %s440
        $region52: #{tpu_custom_call.1} parent=27 // pred_fallthru
          _
      $region28: #{tpu_custom_call.1} parent=5 // pred_fallthru
        _
      %p460 = scmp.le.s32.totalorder 2, %s19
      // Predicated region
      $region53: #{tpu_custom_call.1} parent=5 // pred_check
        %p461 = pneg %p460
      $region54: #{tpu_custom_call.1} parent=5 // pred_check_branch
        %463 = sbr.rel (%p461) target = $region56
      $region55: #{tpu_custom_call.1} parent=5 // pred_region
        %s464 = ssub.s32 %s19, 2
        // Predicated region
        $region57: #{tpu_custom_call.1} parent=55 // pred_check
          %p465 = pneg %p128
        $region58: #{tpu_custom_call.1} parent=55 // pred_check_branch
          %467 = sbr.rel (%p465) target = $region60
        $region59: #{tpu_custom_call.1} parent=55 // pred_region
          %p468 = scmp.lt.s32.totalorder %s30, 1
          %s469 = scalar_select %p468, %s30, 1
          %s470 = scalar_lea.vmem %s2, %s469
        $region60: #{tpu_custom_call.1} parent=55 // pred_fallthru
          _
        // Predicated region
        $region61: #{tpu_custom_call.1} parent=55 // pred_check
          %p471 = pneg %p154
        $region62: #{tpu_custom_call.1} parent=55 // pred_check_branch
          %473 = sbr.rel (%p471) target = $region64
        $region63: #{tpu_custom_call.1} parent=55 // pred_region
          %s474 = sand.u32 %s139, 1
          %s475 = scalar_lea.sflag [#allocation6], %s474
          %s476 = sand.u32 %s139, 1
          %s477 = smul.addr %s476, 2
          %s478 = scalar_lea.vmem [#allocation9], %s477
          %479 = dma.done %s475, 32
        $region64: #{tpu_custom_call.1} parent=55 // pred_fallthru
          _
      $region56: #{tpu_custom_call.1} parent=5 // pred_fallthru
        _
    $region6: #{tpu_custom_call.1} parent=1 // loop_footer
      %s23 = sadd.s32 1, %s19
    $region7: #{tpu_custom_call.1} parent=1 // loop_footer_branch
      %18 = sbr.rel target = $region3
    $region8: #{tpu_custom_call.1} parent=1 // loop_exit
      _
    %480 = vsyncpa [#allocation5], 1
    %s481 = scalar_lea.sflag [#allocation5], 1
    %482 = vsyncpa %s481, 1
    %483 = vsyncpa [#allocation8], 1
    %s484 = scalar_lea.sflag [#allocation8], 1
    %485 = vsyncpa %s484, 1
    %486 = vsyncpa [#allocation6], 1
    %s487 = scalar_lea.sflag [#allocation6], 1
    %488 = vsyncpa %s487, 1

</llo_original>
